<compile_context>
chip_gen: v7x
topology: tpu7x:2x2x1
jax: 0.10.0
libtpu: 0.0.40
codegen_flags: <defaults>
</compile_context>

<pallas_src>
import functools

import jax
import jax.numpy as jnp
from jax.experimental import pallas as pl
from jax.experimental.pallas import tpu as pltpu

ALPHA = 0.25
GAMMA = 2.0
LANES = 128
MAX_ROW_TILE = 4096   # (4096, 128) f32 block = 2 MiB per input


def _round_up(x, m):
    return ((x + m - 1) // m) * m


def _tensorcores_per_device():
    """Best-effort count of TensorCores addressable by one pallas_call.

    Defaults to 1 (correct & fastest for v5e/v6e); returns 2 only when the
    hardware clearly reports a 2-TensorCore chip (v7x), in which case the
    wrapper shards grid axis 0 across cores with CORE_PARALLEL.
    """
    get_info = getattr(pltpu, "get_tpu_info", None)
    if get_info is not None:
        try:
            info = get_info()
            for name in ("num_cores", "num_tensorcores", "tensorcore_count"):
                v = getattr(info, name, None)
                if isinstance(v, int) and 1 <= v <= 8:
                    return min(v, 2)
        except Exception:
            pass
    try:
        kind = str(jax.devices()[0].device_kind).lower()
        if "v7" in kind or "7x" in kind:
            return 2
    except Exception:
        pass
    return 1


def _focal_terms(p, t, alpha, gamma):
    """Per-element focal loss, matching the PyTorch module (incl. BCELoss's
    -100 clamp on the log terms). Used by the kernel and the tail path."""
    p = p.astype(jnp.float32)
    t = t.astype(jnp.float32)
    one_m_p = 1.0 - p
    one_m_t = 1.0 - t
    log_p = jnp.maximum(jnp.log(p), -100.0)
    log_1mp = jnp.maximum(jnp.log(one_m_p), -100.0)
    # Negative BCE; its sign is folded into the alpha factor below.
    nbce = t * log_p + one_m_t * log_1mp
    pt = p * t + one_m_p * one_m_t
    one_m_pt = 1.0 - pt
    if gamma == 2.0:
        focal_w = one_m_pt * one_m_pt          # avoid exp/log-based pow on EUP
    else:
        focal_w = one_m_pt ** gamma
    # alpha*t + (1-alpha)*(1-t) == (1-alpha) + (2*alpha-1)*t ; negated here so
    # the BCE minus sign is absorbed (one fewer negate per element).
    neg_alpha_w = (alpha - 1.0) + (1.0 - 2.0 * alpha) * t
    return nbce * focal_w * neg_alpha_w


def _focal_loss_kernel(p_ref, t_ref, o_ref, *, alpha, gamma, rows, row_tile,
                       steps_per_split, need_mask):
    c = pl.program_id(0)   # split (TensorCore) index
    i = pl.program_id(1)   # step within the split (reduction axis)

    @pl.when(i == 0)
    def _():
        o_ref[...] = jnp.zeros_like(o_ref)

    loss = _focal_terms(p_ref[...], t_ref[...], alpha, gamma)

    if need_mask:
        row0 = (c * steps_per_split + i) * row_tile
        is_partial = row0 + row_tile > rows    # boundary block or dummy step

        @pl.when(is_partial)
        def _():
            row_ids = row0 + jax.lax.broadcasted_iota(jnp.int32, loss.shape, 0)
            masked = jnp.where(row_ids < rows, loss, 0.0)
            o_ref[...] += jnp.sum(masked, axis=0, keepdims=True)

        @pl.when(jnp.logical_not(is_partial))
        def _():
            o_ref[...] += jnp.sum(loss, axis=0, keepdims=True)
    else:
        o_ref[...] += jnp.sum(loss, axis=0, keepdims=True)


def focal_loss(probs, targets, alpha=ALPHA, gamma=GAMMA):
    """Scalar float32 mean focal loss, matching the PyTorch module."""
    assert probs.shape == targets.shape
    n = probs.size
    alpha = float(alpha)
    gamma = float(gamma)

    p_flat = probs.reshape(-1)
    t_flat = targets.reshape(-1)

    rows = n // LANES
    rem = n - rows * LANES
    total = jnp.zeros((), jnp.float32)

    if rows > 0:
        bulk = rows * LANES
        p2 = (p_flat if rem == 0 else p_flat[:bulk]).reshape(rows, LANES)
        t2 = (t_flat if rem == 0 else t_flat[:bulk]).reshape(rows, LANES)

        # ---- grid / tile selection -------------------------------------
        num_splits = _tensorcores_per_device()
        if num_splits > 1 and rows < 16 * num_splits:
            num_splits = 1                      # too little work to shard

        steps_per_split = max(1, pl.cdiv(rows, num_splits * MAX_ROW_TILE))
        blocks_total = num_splits * steps_per_split
        if blocks_total == 1:
            row_tile = rows                     # single full-extent block
        else:
            row_tile = _round_up(pl.cdiv(rows, blocks_total), 8)

        blocks_needed = pl.cdiv(rows, row_tile)
        steps_per_split = pl.cdiv(blocks_needed, num_splits)
        blocks_total = num_splits * steps_per_split
        clamp = blocks_total > blocks_needed    # dummy steps (pathological only)
        need_mask = clamp or (blocks_needed * row_tile != rows)
        max_block = blocks_needed - 1

        def in_map(c, i, s=steps_per_split, clamp=clamp, m=max_block):
            b = c * s + i
            if clamp:
                # Dummy trailing steps re-read the last valid block (never OOB);
                # their contribution is zeroed by the in-kernel row mask.
                b = jnp.minimum(b, m)
            return (b, 0)

        kernel = functools.partial(
            _focal_loss_kernel, alpha=alpha, gamma=gamma, rows=rows,
            row_tile=row_tile, steps_per_split=steps_per_split,
            need_mask=need_mask)

        dim0 = pltpu.CORE_PARALLEL if num_splits > 1 else pltpu.ARBITRARY

        partials = pl.pallas_call(
            kernel,
            out_shape=jax.ShapeDtypeStruct((1, num_splits * LANES),
                                           jnp.float32),
            grid_spec=pltpu.PrefetchScalarGridSpec(
                num_scalar_prefetch=0,
                grid=(num_splits, steps_per_split),
                in_specs=[
                    pl.BlockSpec((row_tile, LANES), in_map),
                    pl.BlockSpec((row_tile, LANES), in_map),
                ],
                out_specs=pl.BlockSpec((1, LANES), lambda c, i: (0, c)),
            ),
            compiler_params=pltpu.CompilerParams(
                dimension_semantics=(dim0, pltpu.ARBITRARY)),
        )(p2, t2)
        total = total + jnp.sum(partials)

    if rem:
        # <128-element tail: cheaper in plain JAX than padding/copying inputs.
        total = total + jnp.sum(
            _focal_terms(p_flat[rows * LANES:], t_flat[rows * LANES:],
                         alpha, gamma))

    return total / jnp.float32(n)


def _focal_loss_ref(probs, targets, alpha=ALPHA, gamma=GAMMA):
    """Direct transcription of the PyTorch forward (independent of the kernel)."""
    p = probs.astype(jnp.float32)
    t = targets.astype(jnp.float32)
    bce = -(t * jnp.maximum(jnp.log(p), -100.0)
            + (1.0 - t) * jnp.maximum(jnp.log(1.0 - p), -100.0))
    pt = p * t + (1.0 - p) * (1.0 - t)
    focal_w = (1.0 - pt) ** gamma
    loss = focal_w * bce
    loss = alpha * t * loss + (1.0 - alpha) * (1.0 - t) * loss
    return jnp.mean(loss)


if __name__ == "__main__":
    key = jax.random.PRNGKey(0)

    def check(shape):
        kp, kt = jax.random.split(jax.random.fold_in(key, sum(shape)))
        probs = jax.nn.sigmoid(jax.random.normal(kp, shape, dtype=jnp.float32))
        targets = (jax.random.uniform(kt, shape) > 0.5).astype(jnp.float32)
        out = jax.block_until_ready(focal_loss(probs, targets))
        ref = jax.block_until_ready(_focal_loss_ref(probs, targets))
        assert jnp.allclose(out, ref, rtol=2e-5, atol=1e-6), (shape, out, ref)

    # Primary small NCHW case (segmentation-style probability map + targets).
    check((2, 4, 16, 16))
    # Odd size exercising the <128-element tail path and a full-extent tile.
    check((3, 5, 17, 11))
    # Exact multi-block grid (no mask): single 2560-row block / clean 2-way split.
    check((2, 8, 160, 128))
    # Non-divisible row count: exercises the pl.when-gated boundary mask path.
    check((2, 8, 160, 257))

    print("KERNEL_OK")
</pallas_src>

<mosaic_0001>
module attributes {stable_mosaic.version = 11 : i64} {
  func.func @_focal_loss_kernel(%arg0: i32, %arg1: i32, %arg2: memref<16x128xf32, #tpu.memory_space<vmem>>, %arg3: memref<16x128xf32, #tpu.memory_space<vmem>>, %arg4: memref<1x128xf32, #tpu.memory_space<vmem>>) attributes {dimension_semantics = [#tpu.dimension_semantics<arbitrary>, #tpu.dimension_semantics<arbitrary>], iteration_bounds = array<i64: 1, 1>, scalar_prefetch = 0 : i64, scratch_operands = 0 : i64, tpu.core_type = #tpu.core_type<tc>, window_params = [{transform_indices = @transform_0, window_bounds = array<i64: 16, 128>}, {transform_indices = @transform_1, window_bounds = array<i64: 16, 128>}, {transform_indices = @transform_2, window_bounds = array<i64: 1, 128>}]} {
    %c0_i32 = arith.constant 0 : i32
    %0 = arith.cmpi eq, %arg1, %c0_i32 : i32
    %1 = arith.extui %0 : i1 to i32
    %c0_i32_0 = arith.constant 0 : i32
    %2 = arith.cmpi ne, %1, %c0_i32_0 : i32
    scf.if %2 {
      %cst_15 = arith.constant 0.000000e+00 : f32
      %35 = vector.broadcast %cst_15 : f32 to vector<1x128xf32>
      %c0_16 = arith.constant 0 : index
      %c0_17 = arith.constant 0 : index
      %36 = vector.load %arg4[%c0_16, %c0_17] : memref<1x128xf32, #tpu.memory_space<vmem>>, vector<1x128xf32>
      tpu.vector_store %arg4[%c0_16, %c0_17], %35 {strides = array<i32>} : memref<1x128xf32, #tpu.memory_space<vmem>>, vector<1x128xf32>,
    } else {
    }
    %c0 = arith.constant 0 : index
    %c0_1 = arith.constant 0 : index
    %3 = vector.load %arg2[%c0, %c0_1] : memref<16x128xf32, #tpu.memory_space<vmem>>, vector<16x128xf32>
    %c0_2 = arith.constant 0 : index
    %c0_3 = arith.constant 0 : index
    %4 = vector.load %arg3[%c0_2, %c0_3] : memref<16x128xf32, #tpu.memory_space<vmem>>, vector<16x128xf32>
    %cst = arith.constant 1.000000e+00 : f32
    %5 = vector.broadcast %cst : f32 to vector<16x128xf32>
    %6 = arith.subf %5, %3 : vector<16x128xf32>
    %cst_4 = arith.constant 1.000000e+00 : f32
    %7 = vector.broadcast %cst_4 : f32 to vector<16x128xf32>
    %8 = arith.subf %7, %4 : vector<16x128xf32>
    %9 = math.log %3 : vector<16x128xf32>
    %cst_5 = arith.constant -1.000000e+02 : f32
    %10 = vector.broadcast %cst_5 : f32 to vector<16x128xf32>
    %11 = arith.maximumf %9, %10 : vector<16x128xf32>
    %12 = math.log %6 : vector<16x128xf32>
    %cst_6 = arith.constant -1.000000e+02 : f32
    %13 = vector.broadcast %cst_6 : f32 to vector<16x128xf32>
    %14 = arith.maximumf %12, %13 : vector<16x128xf32>
    %15 = arith.mulf %4, %11 : vector<16x128xf32>
    %16 = arith.mulf %8, %14 : vector<16x128xf32>
    %17 = arith.addf %15, %16 : vector<16x128xf32>
    %18 = arith.mulf %3, %4 : vector<16x128xf32>
    %19 = arith.mulf %6, %8 : vector<16x128xf32>
    %20 = arith.addf %18, %19 : vector<16x128xf32>
    %cst_7 = arith.constant 1.000000e+00 : f32
    %21 = vector.broadcast %cst_7 : f32 to vector<16x128xf32>
    %22 = arith.subf %21, %20 : vector<16x128xf32>
    %23 = arith.mulf %22, %22 : vector<16x128xf32>
    %cst_8 = arith.constant 5.000000e-01 : f32
    %24 = vector.broadcast %cst_8 : f32 to vector<16x128xf32>
    %25 = arith.mulf %24, %4 : vector<16x128xf32>
    %cst_9 = arith.constant -7.500000e-01 : f32
    %26 = vector.broadcast %cst_9 : f32 to vector<16x128xf32>
    %27 = arith.addf %26, %25 : vector<16x128xf32>
    %28 = arith.mulf %17, %23 : vector<16x128xf32>
    %29 = arith.mulf %28, %27 : vector<16x128xf32>
    %c0_10 = arith.constant 0 : index
    %c0_11 = arith.constant 0 : index
    %30 = vector.load %arg4[%c0_10, %c0_11] : memref<1x128xf32, #tpu.memory_space<vmem>>, vector<1x128xf32>
    %cst_12 = arith.constant dense<0.000000e+00> : vector<128xf32>
    %31 = vector.multi_reduction <add>, %29, %cst_12 [0] : vector<16x128xf32> to vector<128xf32>
    %32 = vector.shape_cast %31 : vector<128xf32> to vector<1x128xf32>
    %33 = arith.addf %30, %32 : vector<1x128xf32>
    %c0_13 = arith.constant 0 : index
    %c0_14 = arith.constant 0 : index
    %34 = vector.load %arg4[%c0_13, %c0_14] : memref<1x128xf32, #tpu.memory_space<vmem>>, vector<1x128xf32>
    tpu.vector_store %arg4[%c0_13, %c0_14], %33 {strides = array<i32>} : memref<1x128xf32, #tpu.memory_space<vmem>>, vector<1x128xf32>,
    return
  }
  func.func @transform_0(%arg0: i32, %arg1: i32) -> (i32, i32) {
    %c1_i32 = arith.constant 1 : i32
    %0 = arith.muli %arg0, %c1_i32 : i32
    %1 = arith.addi %0, %arg1 : i32
    %c0_i32 = arith.constant 0 : i32
    %c0_i32_0 = arith.constant 0 : i32
    return %1, %c0_i32 : i32, i32
  }
  func.func @transform_1(%arg0: i32, %arg1: i32) -> (i32, i32) {
    %c1_i32 = arith.constant 1 : i32
    %0 = arith.muli %arg0, %c1_i32 : i32
    %1 = arith.addi %0, %arg1 : i32
    %c0_i32 = arith.constant 0 : i32
    %c0_i32_0 = arith.constant 0 : i32
    return %1, %c0_i32 : i32, i32
  }
  func.func @transform_2(%arg0: i32, %arg1: i32) -> (i32, i32) {
    %c0_i32 = arith.constant 0 : i32
    %c0_i32_0 = arith.constant 0 : i32
    return %c0_i32, %arg0 : i32, i32
  }
}

</mosaic_0001>

<llo_original>
// kernel: tpu_custom_call.1
$region0: #{tpu_custom_call.1}
  #allocation0 [shape = 'u32[]', space=smem, size = 0x4, offset = 0x4, fixed_abs, tag = 'smem constant byte address 0x4 - core index']
  #allocation1 [shape = 'u32[144,128]{1,0:T(1,128)}', space=vmem, size = 0x12000, scoped, tag = 'internal scratch']
  %s0 = inlined_call_operand.hbm [shape: f32[16,128], index: 0, kind: input, shape index: {}]
  %s1 = inlined_call_operand.hbm [shape: f32[16,128], index: 1, kind: input, shape index: {}]
  %s2 = inlined_call_operand.hbm [shape: f32[1,128], index: 2, kind: output, shape index: {}]
  %s3 = sld [smem:[#allocation0]]
  $region30: #{tpu_custom_call.1} parent=0
    _
  %s5 = ssub.s32 1, %s3
  %s6 = scalar_select 0, %s5, %s3
  $region1: #{tpu_custom_call.1} parent=0
    #allocation2 [shape = 'u8[8192]{0}', space=vmem, size = 0x2000, scoped, tag = 'input window, operand 0, single buffered']
    #allocation3 [shape = 's32[1]{0}', space=sflag, size = 0x4, scoped, tag = 'scoped memory for tpu_custom_call.1']
    #allocation4 [shape = 's32[1]{0}', space=sflag, size = 0x4, scoped, tag = 'scoped memory for tpu_custom_call.1']
    #allocation5 [shape = 'u8[8192]{0}', space=vmem, size = 0x2000, scoped, tag = 'input window, operand 1, single buffered']
    #allocation6 [shape = 's32[1]{0}', space=sflag, size = 0x4, scoped, tag = 'scoped memory for tpu_custom_call.1']
    #allocation7 [shape = 'u8[512]{0}', space=vmem, size = 0x400, scoped, tag = 'output window, operand 0, single buffered']
    %7 = vsyncpa [#allocation3], 0
    %8 = vsyncpa [#allocation6], 0
    %9 = vsyncpa [#allocation4], 0
    // Predicated region
    $region2: #{tpu_custom_call.1} parent=1 // pred_check
      _
    $region3: #{tpu_custom_call.1} parent=1 // pred_check_branch
      %11 = sbr.rel (0) target = $region5
    $region4: #{tpu_custom_call.1} parent=1 // pred_region
      %s12 = sadd.s32 0, 0
      %s13 = smul.u32 2, %s12
      %s15 = ssub.s32 256, 256
      %16 = vsyncadd [#allocation3], %s15
      %s17 = smul.addr %s13, 128
      %s18 = scalar_lea.hbm %s0, %s17
      %s19 = sshll.u32 [#allocation2], 4
      %s20 = int_to_ptr.vmem [resolvable:$true] %s19
      %25 = dma.hbm_to_vmem [thread:$0]  %s18, 256, %s20, [#allocation3], 128, 128, 8
    $region5: #{tpu_custom_call.1} parent=1 // pred_fallthru
      _
    // Predicated region
    $region6: #{tpu_custom_call.1} parent=1 // pred_check
      _
    $region7: #{tpu_custom_call.1} parent=1 // pred_check_branch
      %27 = sbr.rel (0) target = $region9
    $region8: #{tpu_custom_call.1} parent=1 // pred_region
      %s28 = sadd.s32 0, 0
      %s29 = smul.u32 2, %s28
      %s31 = ssub.s32 256, 256
      %32 = vsyncadd [#allocation6], %s31
      %s33 = smul.addr %s29, 128
      %s34 = scalar_lea.hbm %s1, %s33
      %s35 = sshll.u32 [#allocation5], 4
      %s36 = int_to_ptr.vmem [resolvable:$true] %s35
      %41 = dma.hbm_to_vmem [thread:$0]  %s34, 256, %s36, [#allocation6], 128, 128, 8
    $region9: #{tpu_custom_call.1} parent=1 // pred_fallthru
      _
    // Predicated region
    $region10: #{tpu_custom_call.1} parent=1 // pred_check
      _
    $region11: #{tpu_custom_call.1} parent=1 // pred_check_branch
      %43 = sbr.rel (0) target = $region13
    $region12: #{tpu_custom_call.1} parent=1 // pred_region
      %44 = dma.done [#allocation3], 256
    $region13: #{tpu_custom_call.1} parent=1 // pred_fallthru
      _
    // Predicated region
    $region14: #{tpu_custom_call.1} parent=1 // pred_check
      _
    $region15: #{tpu_custom_call.1} parent=1 // pred_check_branch
      %46 = sbr.rel (0) target = $region17
    $region16: #{tpu_custom_call.1} parent=1 // pred_region
      %47 = dma.done [#allocation6], 256
    $region17: #{tpu_custom_call.1} parent=1 // pred_fallthru
      _
    %s48 = sadd.s32 0, 0
    %s49 = smul.u32 2, %s48
    %s50 = sadd.s32 0, 0
    %s51 = smul.u32 2, %s50
    %p52 = scmp.eq.s32.totalorder 0, 0
    // Predicated region
    $region18: #{tpu_custom_call.1} parent=1 // pred_check
      %p53 = pneg %p52
    $region19: #{tpu_custom_call.1} parent=1 // pred_check_branch
      %55 = sbr.rel (%p53) target = $region21
    $region20: #{tpu_custom_call.1} parent=1 // pred_region
      %56 = vst [vmem:[#allocation7] sm:$0x1] 0.0
    $region21: #{tpu_custom_call.1} parent=1 // pred_fallthru
      _
    %v57 = vld [vmem:[#allocation2] sm:$0xff]
    %v58 = vld [vmem:[#allocation2 + $0x8] sm:$0xff]
    %v59 = vld [vmem:[#allocation5] sm:$0xff]
    %v60 = vld [vmem:[#allocation5 + $0x8] sm:$0xff]
    %v61 = vsub.f32 1.0, %v57
    %v62 = vsub.f32 1.0, %v58
    %v63 = vsub.f32 1.0, %v59
    %v64 = vsub.f32 1.0, %v60
    %v65 = vlog2.pop %v57
    %v66 = vmul.f32 %v65, 0.6931472
    %v67 = vlog2.pop %v58
    %v68 = vmul.f32 %v67, 0.6931472
    %v69 = vmax.f32 %v66, -100.0
    %v70 = vmax.f32 %v68, -100.0
    %v71 = vlog2.pop %v61
    %v72 = vmul.f32 %v71, 0.6931472
    %v73 = vlog2.pop %v62
    %v74 = vmul.f32 %v73, 0.6931472
    %v75 = vmax.f32 %v72, -100.0
    %v76 = vmax.f32 %v74, -100.0
    %v77 = vmul.f32 %v59, %v69
    %v78 = vmul.f32 %v60, %v70
    %v79 = vmul.f32 %v63, %v75
    %v80 = vmul.f32 %v64, %v76
    %v81 = vadd.f32 %v77, %v79
    %v82 = vadd.f32 %v78, %v80
    %v83 = vmul.f32 %v57, %v59
    %v84 = vmul.f32 %v58, %v60
    %v85 = vmul.f32 %v61, %v63
    %v86 = vmul.f32 %v62, %v64
    %v87 = vadd.f32 %v83, %v85
    %v88 = vadd.f32 %v84, %v86
    %v89 = vsub.f32 1.0, %v87
    %v90 = vsub.f32 1.0, %v88
    %v91 = vmul.f32 %v89, %v89
    %v92 = vmul.f32 %v90, %v90
    %v93 = vmul.f32 %v59, 0.5
    %v94 = vmul.f32 %v60, 0.5
    %v95 = vadd.f32 %v93, -0.75
    %v96 = vadd.f32 %v94, -0.75
    %v97 = vmul.f32 %v81, %v91
    %v98 = vmul.f32 %v82, %v92
    %v99 = vmul.f32 %v97, %v95
    %v100 = vmul.f32 %v98, %v96
    %v101 = vld [vmem:[#allocation7] sm:$0x1]
    %v102 = vadd.f32 %v99, %v100
    %v103 = vrot.slane %v102, 4
    %v104 = vadd.f32 %v102, %v103
    %v105 = vrot.slane %v104, 2
    %v106 = vadd.f32 %v104, %v105
    %v107 = vrot.slane %v106, 1
    %v108 = vadd.f32 %v106, %v107
    %v109 = vadd.f32 %v101, %v108
    %110 = vst [vmem:[#allocation7] sm:$0x1] %v109
    // Predicated region
    $region22: #{tpu_custom_call.1} parent=1 // pred_check
      _
    $region23: #{tpu_custom_call.1} parent=1 // pred_check_branch
      %112 = sbr.rel (0) target = $region25
    $region24: #{tpu_custom_call.1} parent=1 // pred_region
      %s114 = ssub.s32 16, 16
      %115 = vsyncadd [#allocation4], %s114
      %s117 = sshll.u32 [#allocation7], 4
      %s118 = int_to_ptr.vmem [resolvable:$true] %s117
      %120 = dma.vmem_to_hbm [thread:$0]  %s118, 16, %s2, [#allocation4]
    $region25: #{tpu_custom_call.1} parent=1 // pred_fallthru
      _
    // Predicated region
    $region26: #{tpu_custom_call.1} parent=1 // pred_check
      _
    $region27: #{tpu_custom_call.1} parent=1 // pred_check_branch
      %122 = sbr.rel (0) target = $region29
    $region28: #{tpu_custom_call.1} parent=1 // pred_region
      %123 = dma.done [#allocation4], 16
    $region29: #{tpu_custom_call.1} parent=1 // pred_fallthru
      _
    %124 = vsyncpa [#allocation3], 1
    %125 = vsyncpa [#allocation6], 1
    %126 = vsyncpa [#allocation4], 1

</llo_original>
